<compile_context>
chip_gen: v7x
topology: tpu7x:2x2x1
jax: 0.10.0
libtpu: 0.0.40
codegen_flags: <defaults>
</compile_context>

<pallas_src>
import math

import jax
import jax.numpy as jnp
from jax.experimental import pallas as pl
from jax.experimental.pallas import tpu as pltpu

_SQRT_2_OVER_PI = math.sqrt(2.0 / math.pi)
_INV_SQRT_2 = 1.0 / math.sqrt(2.0)

# Small robustness shims (older JAX spellings).
_CompilerParams = getattr(pltpu, "CompilerParams", None) or getattr(
    pltpu, "TPUCompilerParams")


def _recip(x):
    if hasattr(pl, "reciprocal"):
        return pl.reciprocal(x, approx=True)   # EUP vrcp, off the VALU
    return 1.0 / x


def _gelu_tanh(x):
    # torch.nn.GELU(approximate='tanh')
    return 0.5 * x * (1.0 + jnp.tanh(_SQRT_2_OVER_PI * (x + 0.044715 * x * x * x)))


def _erf(x):
    # Abramowitz & Stegun 7.1.26 rational approximation, |err| <= 1.5e-7.
    # Built only from exp/mul/add/select/reciprocal so it always lowers on the
    # TPU VPU/EUP (lax.erf lowering availability is not guaranteed in Pallas).
    a1, a2, a3, a4, a5 = (0.254829592, -0.284496736, 1.421413741,
                          -1.453152027, 1.061405429)
    p = 0.3275911
    sgn = jnp.where(x >= 0.0, 1.0, -1.0)
    ax = jnp.abs(x)
    t = _recip(1.0 + p * ax)
    poly = ((((a5 * t + a4) * t + a3) * t + a2) * t + a1) * t
    return sgn * (1.0 - poly * jnp.exp(-ax * ax))


def _gelu_exact(x):
    # torch.nn.GELU() (default / erf form)
    # TODO(synk): uses the A&S erf approximation (|err|<=1.5e-7), not bit-exact erf.
    return 0.5 * x * (1.0 + _erf(x * _INV_SQRT_2))


def _epilogue(mm_f32, bias_f32):
    z1 = mm_f32 + bias_f32
    g1 = _gelu_tanh(z1)
    z2 = g1 + mm_f32            # addmm(GELU1_res, batch1, batch2) reuses mm
    return _gelu_exact(z2)


def _kernel_direct(b1_ref, b2_ref, in_ref, o_ref):
    """f32 output: accumulate directly into o_ref (resident across k)."""
    k = pl.program_id(2)

    @pl.when(k == 0)
    def _():
        o_ref[...] = jnp.zeros_like(o_ref)

    o_ref[...] += jnp.dot(b1_ref[...], b2_ref[...],
                          preferred_element_type=jnp.float32)

    @pl.when(k == pl.num_programs(2) - 1)
    def _():
        mm = o_ref[...]
        o_ref[...] = _epilogue(mm, in_ref[...].astype(jnp.float32))


def _kernel_scratch(b1_ref, b2_ref, in_ref, o_ref, acc_ref):
    """Low-precision output: accumulate in an f32 VMEM scratch, cast at end."""
    k = pl.program_id(2)

    @pl.when(k == 0)
    def _():
        acc_ref[...] = jnp.zeros_like(acc_ref)

    acc_ref[...] += jnp.dot(b1_ref[...], b2_ref[...],
                            preferred_element_type=jnp.float32)

    @pl.when(k == pl.num_programs(2) - 1)
    def _():
        mm = acc_ref[...]
        o_ref[...] = _epilogue(mm, in_ref[...].astype(jnp.float32)).astype(o_ref.dtype)


def _round_up(x, m):
    return (x + m - 1) // m * m


def addmm_gelu2(inp, batch1, batch2, *, tm=None, tn=None, tk=None,
                matmul_dtype=None):
    """gelu_exact(gelu_tanh(batch1 @ batch2 + inp) + batch1 @ batch2).

    matmul_dtype=jnp.bfloat16 casts only the matmul inputs (f32 accumulation
    and f32 epilogue are kept) — ~3x MXU throughput and half the LHS/RHS
    HBM/VMEM traffic on all TPU generations; default None = exact f32 path.
    """
    M, K = batch1.shape
    K2, N = batch2.shape
    assert K == K2, "batch1/batch2 inner dims must match"
    assert inp.shape == (M, N), "input (bias) must be (M, N)"

    if matmul_dtype is not None:
        batch1 = batch1.astype(matmul_dtype)
        batch2 = batch2.astype(matmul_dtype)

    out_dtype = inp.dtype
    lhs_item = jnp.dtype(batch1.dtype).itemsize
    bias_item = jnp.dtype(inp.dtype).itemsize
    out_item = jnp.dtype(out_dtype).itemsize
    use_direct = out_dtype == jnp.float32
    # Sublane packing multiple of the output dtype: 8 (f32) / 16 (bf16) / 32 (int8).
    out_sublane = 8 * max(1, 4 // out_item)

    # ---- generation-aware VMEM budget (v5e/v6e: 128 MiB, v7x: 64 MiB/core) ----
    try:
        vmem_cap = int(pltpu.get_tpu_info().vmem_capacity_bytes)
        if vmem_cap <= 0:
            raise ValueError
    except Exception:
        vmem_cap = 64 << 20            # conservative fallback (v7x size)
    vmem_budget = min(max(vmem_cap - (20 << 20), 24 << 20), 88 << 20)

    def vmem_bytes(tm_, tn_, tk_):
        # double-buffered lhs/rhs/bias/out (+ f32 scratch for narrow outputs)
        return (2 * (tm_ * tk_ + tk_ * tn_) * lhs_item
                + 2 * tm_ * tn_ * bias_item
                + 2 * tm_ * tn_ * out_item
                + (0 if use_direct else tm_ * tn_ * 4))

    # ---- K tile: keep the contraction dim 128-aligned; pad K by <=127 zero
    # columns (contributes nothing to the dot) instead of a full-array pad. ----
    Kp = _round_up(K, 128)
    tk_target = max(128, min(_round_up(tk if tk is not None else 1024, 128), Kp))
    tk_sel = 128
    for cand in range(tk_target, 127, -128):   # largest 128-mult divisor of Kp
        if Kp % cand == 0:
            tk_sel = cand
            break

    # ---- N tile: lane-dense (multiple of 128) unless N itself is smaller ----
    tn_target = tn if tn is not None else 1024
    if N <= tn_target:
        tn_sel = N if (N % 128 == 0 or N < 128) else (N // 128) * 128
    else:
        tn_sel = max(128, (tn_target // 128) * 128)

    # ---- M tile: aligned to the output dtype's sublane packing ----
    tm_target = tm if tm is not None else 1024
    if M <= tm_target:
        tm_sel = M if (M % out_sublane == 0 or M < out_sublane) \
            else (M // out_sublane) * out_sublane
    else:
        tm_sel = max(out_sublane, (tm_target // out_sublane) * out_sublane)

    # Grow toward 2048-wide tiles where the VMEM budget allows (128 MiB parts),
    # keeping >= 2 parallel (i, j) blocks so both v7x TensorCores get work.
    if tn is None:
        while (tn_sel < 2048 and tn_sel % 128 == 0 and N >= 2 * tn_sel
               and pl.cdiv(M, tm_sel) * pl.cdiv(N, 2 * tn_sel) >= 2
               and vmem_bytes(tm_sel, 2 * tn_sel, tk_sel) <= vmem_budget):
            tn_sel *= 2
    if tm is None:
        while (tm_sel < 2048 and tm_sel % out_sublane == 0 and M >= 2 * tm_sel
               and pl.cdiv(M, 2 * tm_sel) * pl.cdiv(N, tn_sel) >= 2
               and vmem_bytes(2 * tm_sel, tn_sel, tk_sel) <= vmem_budget):
            tm_sel *= 2

    # Shrink to fit the budget (tm first: keeps stores lane-dense).
    while vmem_bytes(tm_sel, tn_sel, tk_sel) > vmem_budget:
        if tm_sel >= 2 * out_sublane:
            tm_sel = _round_up(tm_sel // 2, out_sublane)
        elif tk_sel >= 512 and tk_sel % 256 == 0:
            tk_sel //= 2
        elif tn_sel >= 256:
            tn_sel = _round_up(tn_sel // 2, 128)
        else:
            break

    # Keep at least two parallel (i, j) blocks (v7x has 2 TensorCores);
    # sacrifice tm, not tn.
    if pl.cdiv(M, tm_sel) * pl.cdiv(N, tn_sel) < 2 and M > out_sublane:
        tm_sel = _round_up(pl.cdiv(M, 2), out_sublane)

    # Pad only the K tail (<=127 zeros); M/N tails use partial edge blocks.
    grid_k = Kp // tk_sel
    if Kp != K:
        batch1 = jnp.pad(batch1, ((0, 0), (0, Kp - K)))
        batch2 = jnp.pad(batch2, ((0, Kp - K), (0, 0)))

    grid = (pl.cdiv(M, tm_sel), pl.cdiv(N, tn_sel), grid_k)

    kernel = _kernel_direct if use_direct else _kernel_scratch
    scratch_shapes = [] if use_direct else [pltpu.VMEM((tm_sel, tn_sel), jnp.float32)]

    need = vmem_bytes(tm_sel, tn_sel, tk_sel)
    vmem_limit = int(min(max(2 * need + (8 << 20), 32 << 20), vmem_cap - (4 << 20)))

    call_kwargs = {}
    if hasattr(pl, "CostEstimate"):
        call_kwargs["cost_estimate"] = pl.CostEstimate(
            flops=int(2 * M * N * K),
            transcendentals=int(3 * M * N),     # tanh + exp + rcp per element
            bytes_accessed=int((M * K + K * N) * lhs_item
                               + M * N * (bias_item + out_item)))

    out = pl.pallas_call(
        kernel,
        out_shape=jax.ShapeDtypeStruct((M, N), out_dtype),
        grid_spec=pltpu.PrefetchScalarGridSpec(
            num_scalar_prefetch=0,
            grid=grid,
            in_specs=[
                pl.BlockSpec((tm_sel, tk_sel), lambda i, j, k: (i, k)),  # batch1
                pl.BlockSpec((tk_sel, tn_sel), lambda i, j, k: (k, j)),  # batch2
                pl.BlockSpec((tm_sel, tn_sel), lambda i, j, k: (i, j)),  # input
            ],
            out_specs=pl.BlockSpec((tm_sel, tn_sel), lambda i, j, k: (i, j)),
            scratch_shapes=scratch_shapes,
        ),
        compiler_params=_CompilerParams(
            dimension_semantics=("parallel", "parallel", "arbitrary"),
            vmem_limit_bytes=vmem_limit,
        ),
        **call_kwargs,
    )(batch1, batch2, inp)
    return out


def reference(inp, batch1, batch2):
    mm = jnp.dot(batch1.astype(jnp.float32), batch2.astype(jnp.float32),
                 precision=jax.lax.Precision.HIGHEST)
    z1 = mm + inp.astype(jnp.float32)
    g1 = jax.nn.gelu(z1, approximate=True)     # GELU(approximate='tanh')
    z2 = g1 + mm                               # addmm(GELU1_res, batch1, batch2)
    return jax.nn.gelu(z2, approximate=False).astype(inp.dtype)  # exact GELU


if __name__ == "__main__":
    # Case 1: small MXU-friendly shapes, exact f32 matmul path.
    k1, k2, k3 = jax.random.split(jax.random.PRNGKey(0), 3)
    M, K, N = 128, 256, 128
    batch1 = jax.random.normal(k1, (M, K), dtype=jnp.float32)
    batch2 = jax.random.normal(k2, (K, N), dtype=jnp.float32)
    inp = jax.random.normal(k3, (M, N), dtype=jnp.float32)

    out = jax.block_until_ready(addmm_gelu2(inp, batch1, batch2))
    ref = reference(inp, batch1, batch2)
    assert out.shape == (M, N)
    assert jnp.allclose(out, ref, atol=1e-2, rtol=1e-2), float(
        jnp.max(jnp.abs(out - ref)))

    # Case 2: non-tile-aligned shapes (partial edge blocks, K padded by <=127).
    k4, k5, k6 = jax.random.split(jax.random.PRNGKey(1), 3)
    M2, K2, N2 = 200, 300, 150
    b1s = jax.random.normal(k4, (M2, K2), dtype=jnp.float32)
    b2s = jax.random.normal(k5, (K2, N2), dtype=jnp.float32)
    inps = jax.random.normal(k6, (M2, N2), dtype=jnp.float32)

    out2 = jax.block_until_ready(addmm_gelu2(inps, b1s, b2s))
    ref2 = reference(inps, b1s, b2s)
    assert out2.shape == (M2, N2)
    assert jnp.allclose(out2, ref2, atol=1e-2, rtol=1e-2), float(
        jnp.max(jnp.abs(out2 - ref2)))

    # Case 3: bf16 matmul-input path (recommended for production throughput);
    # compared against a reference using the same bf16-rounded inputs.
    out3 = jax.block_until_ready(
        addmm_gelu2(inp, batch1, batch2, matmul_dtype=jnp.bfloat16))
    ref3 = reference(inp, batch1.astype(jnp.bfloat16), batch2.astype(jnp.bfloat16))
    assert jnp.allclose(out3, ref3, atol=5e-3, rtol=5e-3), float(
        jnp.max(jnp.abs(out3 - ref3)))

    print("KERNEL_OK")
</pallas_src>

<mosaic_0001>
module attributes {stable_mosaic.version = 11 : i64} {
  func.func @_kernel_direct(%arg0: i32, %arg1: i32, %arg2: i32, %arg3: memref<64x256xf32, #tpu.memory_space<vmem>>, %arg4: memref<256x128xf32, #tpu.memory_space<vmem>>, %arg5: memref<64x128xf32, #tpu.memory_space<vmem>>, %arg6: memref<64x128xf32, #tpu.memory_space<vmem>>) attributes {dimension_semantics = [#tpu.dimension_semantics<parallel>, #tpu.dimension_semantics<parallel>, #tpu.dimension_semantics<arbitrary>], iteration_bounds = array<i64: 2, 1, 1>, scalar_prefetch = 0 : i64, scratch_operands = 0 : i64, tpu.core_type = #tpu.core_type<tc>, window_params = [{transform_indices = @transform_0, window_bounds = array<i64: 64, 256>}, {transform_indices = @transform_1, window_bounds = array<i64: 256, 128>}, {transform_indices = @transform_2, window_bounds = array<i64: 64, 128>}, {transform_indices = @transform_3, window_bounds = array<i64: 64, 128>}]} {
    %c0_i32 = arith.constant 0 : i32
    %0 = arith.cmpi eq, %arg2, %c0_i32 : i32
    %1 = arith.extui %0 : i1 to i32
    %c0_i32_0 = arith.constant 0 : i32
    %2 = arith.cmpi ne, %1, %c0_i32_0 : i32
    scf.if %2 {
      %cst_10 = arith.constant 0.000000e+00 : f32
      %12 = vector.broadcast %cst_10 : f32 to vector<64x128xf32>
      %c0_11 = arith.constant 0 : index
      %c0_12 = arith.constant 0 : index
      %13 = vector.load %arg6[%c0_11, %c0_12] : memref<64x128xf32, #tpu.memory_space<vmem>>, vector<64x128xf32>
      tpu.vector_store %arg6[%c0_11, %c0_12], %12 {strides = array<i32>} : memref<64x128xf32, #tpu.memory_space<vmem>>, vector<64x128xf32>,
    } else {
    }
    %c0 = arith.constant 0 : index
    %c0_1 = arith.constant 0 : index
    %3 = vector.load %arg6[%c0, %c0_1] : memref<64x128xf32, #tpu.memory_space<vmem>>, vector<64x128xf32>
    %c0_2 = arith.constant 0 : index
    %c0_3 = arith.constant 0 : index
    %4 = vector.load %arg3[%c0_2, %c0_3] : memref<64x256xf32, #tpu.memory_space<vmem>>, vector<64x256xf32>
    %c0_4 = arith.constant 0 : index
    %c0_5 = arith.constant 0 : index
    %5 = vector.load %arg4[%c0_4, %c0_5] : memref<256x128xf32, #tpu.memory_space<vmem>>, vector<256x128xf32>
    %cst = arith.constant dense<0.000000e+00> : vector<64x128xf32>
    %6 = tpu.matmul %4, %5, %cst {dimension_numbers = #tpu.dot_dimension_numbers<[1], [0], [0], [1], [0, 0, 1, 1], [], []>} : vector<64x256xf32>, vector<256x128xf32>, vector<64x128xf32> -> vector<64x128xf32>
    %7 = arith.addf %3, %6 : vector<64x128xf32>
    %c0_6 = arith.constant 0 : index
    %c0_7 = arith.constant 0 : index
    %8 = vector.load %arg6[%c0_6, %c0_7] : memref<64x128xf32, #tpu.memory_space<vmem>>, vector<64x128xf32>
    tpu.vector_store %arg6[%c0_6, %c0_7], %7 {strides = array<i32>} : memref<64x128xf32, #tpu.memory_space<vmem>>, vector<64x128xf32>,
    %c0_i32_8 = arith.constant 0 : i32
    %9 = arith.cmpi eq, %arg2, %c0_i32_8 : i32
    %10 = arith.extui %9 : i1 to i32
    %c0_i32_9 = arith.constant 0 : i32
    %11 = arith.cmpi ne, %10, %c0_i32_9 : i32
    scf.if %11 {
      %c0_10 = arith.constant 0 : index
      %c0_11 = arith.constant 0 : index
      %12 = vector.load %arg6[%c0_10, %c0_11] : memref<64x128xf32, #tpu.memory_space<vmem>>, vector<64x128xf32>
      %c0_12 = arith.constant 0 : index
      %c0_13 = arith.constant 0 : index
      %13 = vector.load %arg5[%c0_12, %c0_13] : memref<64x128xf32, #tpu.memory_space<vmem>>, vector<64x128xf32>
      %14 = arith.addf %12, %13 : vector<64x128xf32>
      %cst_14 = arith.constant 5.000000e-01 : f32
      %15 = vector.broadcast %cst_14 : f32 to vector<64x128xf32>
      %16 = arith.mulf %15, %14 : vector<64x128xf32>
      %cst_15 = arith.constant 4.471500e-02 : f32
      %17 = vector.broadcast %cst_15 : f32 to vector<64x128xf32>
      %18 = arith.mulf %17, %14 : vector<64x128xf32>
      %19 = arith.mulf %18, %14 : vector<64x128xf32>
      %20 = arith.mulf %19, %14 : vector<64x128xf32>
      %21 = arith.addf %14, %20 : vector<64x128xf32>
      %cst_16 = arith.constant 0.797884583 : f32
      %22 = vector.broadcast %cst_16 : f32 to vector<64x128xf32>
      %23 = arith.mulf %22, %21 : vector<64x128xf32>
      %24 = math.tanh %23 : vector<64x128xf32>
      %cst_17 = arith.constant 1.000000e+00 : f32
      %25 = vector.broadcast %cst_17 : f32 to vector<64x128xf32>
      %26 = arith.addf %25, %24 : vector<64x128xf32>
      %27 = arith.mulf %16, %26 : vector<64x128xf32>
      %28 = arith.addf %27, %12 : vector<64x128xf32>
      %cst_18 = arith.constant 5.000000e-01 : f32
      %29 = vector.broadcast %cst_18 : f32 to vector<64x128xf32>
      %30 = arith.mulf %29, %28 : vector<64x128xf32>
      %cst_19 = arith.constant 0.707106769 : f32
      %31 = vector.broadcast %cst_19 : f32 to vector<64x128xf32>
      %32 = arith.mulf %28, %31 : vector<64x128xf32>
      %cst_20 = arith.constant 0.000000e+00 : f32
      %33 = vector.broadcast %cst_20 : f32 to vector<64x128xf32>
      %34 = arith.cmpf oge, %32, %33 : vector<64x128xf32>
      %cst_21 = arith.constant 1.000000e+00 : f32
      %cst_22 = arith.constant -1.000000e+00 : f32
      %35 = vector.broadcast %cst_21 : f32 to vector<64x128xf32>
      %36 = vector.broadcast %cst_22 : f32 to vector<64x128xf32>
      %37 = arith.select %34, %35, %36 : vector<64x128xi1>, vector<64x128xf32>
      %38 = math.absf %32 : vector<64x128xf32>
      %cst_23 = arith.constant 0.327591091 : f32
      %39 = vector.broadcast %cst_23 : f32 to vector<64x128xf32>
      %40 = arith.mulf %39, %38 : vector<64x128xf32>
      %cst_24 = arith.constant 1.000000e+00 : f32
      %41 = vector.broadcast %cst_24 : f32 to vector<64x128xf32>
      %42 = arith.addf %41, %40 : vector<64x128xf32>
      %43 = tpu.reciprocal %42 {approx = true} : vector<64x128xf32> -> vector<64x128xf32>
      %cst_25 = arith.constant 1.06140542 : f32
      %44 = vector.broadcast %cst_25 : f32 to vector<64x128xf32>
      %45 = arith.mulf %44, %43 : vector<64x128xf32>
      %cst_26 = arith.constant -1.45315206 : f32
      %46 = vector.broadcast %cst_26 : f32 to vector<64x128xf32>
      %47 = arith.addf %45, %46 : vector<64x128xf32>
      %48 = arith.mulf %47, %43 : vector<64x128xf32>
      %cst_27 = arith.constant 1.42141378 : f32
      %49 = vector.broadcast %cst_27 : f32 to vector<64x128xf32>
      %50 = arith.addf %48, %49 : vector<64x128xf32>
      %51 = arith.mulf %50, %43 : vector<64x128xf32>
      %cst_28 = arith.constant -0.284496725 : f32
      %52 = vector.broadcast %cst_28 : f32 to vector<64x128xf32>
      %53 = arith.addf %51, %52 : vector<64x128xf32>
      %54 = arith.mulf %53, %43 : vector<64x128xf32>
      %cst_29 = arith.constant 0.254829586 : f32
      %55 = vector.broadcast %cst_29 : f32 to vector<64x128xf32>
      %56 = arith.addf %54, %55 : vector<64x128xf32>
      %57 = arith.mulf %56, %43 : vector<64x128xf32>
      %cst_30 = arith.constant 0.000000e+00 : f32
      %58 = vector.broadcast %cst_30 : f32 to vector<64x128xf32>
      %59 = arith.subf %58, %38 : vector<64x128xf32>
      %60 = arith.mulf %59, %38 : vector<64x128xf32>
      %61 = math.exp %60 : vector<64x128xf32>
      %62 = arith.mulf %57, %61 : vector<64x128xf32>
      %cst_31 = arith.constant 1.000000e+00 : f32
      %63 = vector.broadcast %cst_31 : f32 to vector<64x128xf32>
      %64 = arith.subf %63, %62 : vector<64x128xf32>
      %65 = arith.mulf %37, %64 : vector<64x128xf32>
      %cst_32 = arith.constant 1.000000e+00 : f32
      %66 = vector.broadcast %cst_32 : f32 to vector<64x128xf32>
      %67 = arith.addf %66, %65 : vector<64x128xf32>
      %68 = arith.mulf %30, %67 : vector<64x128xf32>
      %c0_33 = arith.constant 0 : index
      %c0_34 = arith.constant 0 : index
      %69 = vector.load %arg6[%c0_33, %c0_34] : memref<64x128xf32, #tpu.memory_space<vmem>>, vector<64x128xf32>
      tpu.vector_store %arg6[%c0_33, %c0_34], %68 {strides = array<i32>} : memref<64x128xf32, #tpu.memory_space<vmem>>, vector<64x128xf32>,
    } else {
    }
    return
  }
  func.func @transform_0(%arg0: i32, %arg1: i32, %arg2: i32) -> (i32, i32) {
    %c0_i32 = arith.constant 0 : i32
    return %arg0, %arg2 : i32, i32
  }
  func.func @transform_1(%arg0: i32, %arg1: i32, %arg2: i32) -> (i32, i32) {
    %c0_i32 = arith.constant 0 : i32
    return %arg2, %arg1 : i32, i32
  }
  func.func @transform_2(%arg0: i32, %arg1: i32, %arg2: i32) -> (i32, i32) {
    %c0_i32 = arith.constant 0 : i32
    return %arg0, %arg1 : i32, i32
  }
  func.func @transform_3(%arg0: i32, %arg1: i32, %arg2: i32) -> (i32, i32) {
    %c0_i32 = arith.constant 0 : i32
    return %arg0, %arg1 : i32, i32
  }
}

</mosaic_0001>

<llo_original>
// kernel: tpu_custom_call.1
$region0: #{tpu_custom_call.1}
  #allocation0 [shape = 'u32[]', space=smem, size = 0x4, offset = 0x4, fixed_abs, tag = 'smem constant byte address 0x4 - core index']
  #allocation1 [shape = 'u32[144,128]{1,0:T(1,128)}', space=vmem, size = 0x12000, scoped, tag = 'internal scratch']
  %s0 = inlined_call_operand.hbm [shape: f32[128,256], index: 0, kind: input, shape index: {}]
  %s1 = inlined_call_operand.hbm [shape: f32[256,128], index: 1, kind: input, shape index: {}]
  %s2 = inlined_call_operand.hbm [shape: f32[128,128], index: 2, kind: input, shape index: {}]
  %s3 = inlined_call_operand.hbm [shape: f32[128,128], index: 3, kind: output, shape index: {}]
  %s4 = sld [smem:[#allocation0]]
  $region65: #{tpu_custom_call.1} parent=0
    _
  %s6 = ssub.s32 1, %s4
  %s7 = scalar_select 0, %s6, %s4
  $region1: #{tpu_custom_call.1} parent=0
    #allocation2 [shape = 'u8[131072]{0}', space=vmem, size = 0x20000, scoped, tag = 'input window, operand 0']
    #allocation3 [shape = 's32[2]{0}', space=sflag, size = 0x8, scoped, tag = 'scoped memory for tpu_custom_call.1']
    #allocation4 [shape = 's32[2]{0}', space=sflag, size = 0x8, scoped, tag = 'scoped memory for tpu_custom_call.1']
    #allocation5 [shape = 'u8[131072]{0}', space=vmem, size = 0x20000, scoped, tag = 'input window, operand 1, single buffered']
    #allocation6 [shape = 's32[1]{0}', space=sflag, size = 0x4, scoped, tag = 'scoped memory for tpu_custom_call.1']
    #allocation7 [shape = 'u8[65536]{0}', space=vmem, size = 0x10000, scoped, tag = 'input window, operand 2']
    #allocation8 [shape = 'u8[65536]{0}', space=vmem, size = 0x10000, scoped, tag = 'output window, operand 0']
    %8 = vsyncpa [#allocation3], 0
    %s9 = scalar_lea.sflag [#allocation3], 1
    %10 = vsyncpa %s9, 0
    %11 = vsyncpa [#allocation6], 0
    %12 = vsyncpa [#allocation4], 0
    %s13 = scalar_lea.sflag [#allocation4], 1
    %14 = vsyncpa %s13, 0
    loop: start=0, step=1, limit=4
    $region2: #{tpu_custom_call.1} parent=1 // loop_pre_header
      _
    $region3: #{tpu_custom_call.1} parent=1 // loop_header
      %s16 = sphi 0, %s20
      %p17 = scmp.ge.s32.totalorder %s16, 4
      %s23 = sphi 0, %s42
      %s24 = sphi 0, %s38
      %s25 = sphi 0, %s34
      %s26 = sphi 0, %s23
      %s27 = sphi 0, %s24
      %s28 = sphi 0, %s25
      %s29 = sphi 0, %s26
      %s30 = sphi 0, %s27
      %s31 = sphi 0, %s28
      %s47 = sphi 0, %s49
      %s50 = sphi 0, %s47
      %s51 = sphi 0, %s50
      %s67 = sphi 0, %s51
      %s75 = sphi 0, %s77
      %s78 = sphi 0, %s75
      %s79 = sphi 0, %s78
      %s95 = sphi 0, %s79
      %s103 = sphi 0, %s105
      %s106 = sphi 0, %s103
      %s107 = sphi 0, %s106
      %s123 = sphi 0, %s107
      %s131 = sphi 0, %s133
      %s134 = sphi 0, %s131
      %s135 = sphi 0, %s134
      %s151 = sphi 0, %s135
    $region4: #{tpu_custom_call.1} parent=1 // loop_header_branch
      %19 = sbr.rel (%p17) target = $region8
    $region5: #{tpu_custom_call.1} parent=1 // loop_body
      %s21 = ssub.s32 %s16, 1
      %s22 = ssub.s32 %s16, 2
      %s32 = sadd.s32 1, %s25
      %p33 = scmp.ge.s32.totalorder %s32, 1
      %s34 = scalar_select %p33, 0, %s32
      %s35 = sadd.s32 1, %s24
      %s36 = scalar_select %p33, %s35, %s24
      %p37 = scmp.ge.s32.totalorder %s36, 1
      %s38 = scalar_select %p37, 0, %s36
      %s39 = sadd.s32 1, %s23
      %s40 = scalar_select %p37, %s39, %s23
      %p41 = scmp.ge.s32.totalorder %s40, 2
      %s42 = scalar_select %p41, 0, %s40
      %s43 = ssub.s32 %s23, %s42
      %s44 = ssub.s32 %s25, %s34
      %s45 = sor.u32 %s43, %s44
      %p46 = scmp.eq.s32.totalorder %s45, 0
      %s48 = sadd.s32 %s47, 1
      %s49 = scalar_select %p46, %s47, %s48
      %p52 = pneg %p46
      %p53 = scmp.eq.s32.totalorder %s16, 1
      %p54 = por %p52, %p53
      %p55 = scmp.ne.s32.totalorder %s47, %s50
      %p56 = scmp.eq.s32.totalorder %s16, 0
      %p57 = por %p55, %p56
      %p58 = scmp.ne.s32.totalorder %s47, %s50
      %p59 = scmp.eq.s32.totalorder %s21, 1
      %p60 = por %p58, %p59
      %p61 = scmp.ne.s32.totalorder %s50, %s51
      %p62 = scmp.eq.s32.totalorder %s21, 0
      %p63 = por %p61, %p62
      %p64 = scmp.ne.s32.totalorder %s50, %s51
      %p65 = scmp.eq.s32.totalorder %s22, 1
      %p66 = por %p64, %p65
      %p68 = scmp.ne.s32.totalorder %s51, %s67
      %p69 = scmp.eq.s32.totalorder %s22, 0
      %p70 = por %p68, %p69
      %s71 = ssub.s32 %s25, %s34
      %s72 = ssub.s32 %s24, %s38
      %s73 = sor.u32 %s71, %s72
      %p74 = scmp.eq.s32.totalorder %s73, 0
      %s76 = sadd.s32 %s75, 1
      %s77 = scalar_select %p74, %s75, %s76
      %p80 = pneg %p74
      %p81 = scmp.eq.s32.totalorder %s16, 1
      %p82 = por %p80, %p81
      %p83 = scmp.ne.s32.totalorder %s75, %s78
      %p84 = scmp.eq.s32.totalorder %s16, 0
      %p85 = por %p83, %p84
      %p86 = scmp.ne.s32.totalorder %s75, %s78
      %p87 = scmp.eq.s32.totalorder %s21, 1
      %p88 = por %p86, %p87
      %p89 = scmp.ne.s32.totalorder %s78, %s79
      %p90 = scmp.eq.s32.totalorder %s21, 0
      %p91 = por %p89, %p90
      %p92 = scmp.ne.s32.totalorder %s78, %s79
      %p93 = scmp.eq.s32.totalorder %s22, 1
      %p94 = por %p92, %p93
      %p96 = scmp.ne.s32.totalorder %s79, %s95
      %p97 = scmp.eq.s32.totalorder %s22, 0
      %p98 = por %p96, %p97
      %s99 = ssub.s32 %s23, %s42
      %s100 = ssub.s32 %s24, %s38
      %s101 = sor.u32 %s99, %s100
      %p102 = scmp.eq.s32.totalorder %s101, 0
      %s104 = sadd.s32 %s103, 1
      %s105 = scalar_select %p102, %s103, %s104
      %p108 = pneg %p102
      %p109 = scmp.eq.s32.totalorder %s16, 1
      %p110 = por %p108, %p109
      %p111 = scmp.ne.s32.totalorder %s103, %s106
      %p112 = scmp.eq.s32.totalorder %s16, 0
      %p113 = por %p111, %p112
      %p114 = scmp.ne.s32.totalorder %s103, %s106
      %p115 = scmp.eq.s32.totalorder %s21, 1
      %p116 = por %p114, %p115
      %p117 = scmp.ne.s32.totalorder %s106, %s107
      %p118 = scmp.eq.s32.totalorder %s21, 0
      %p119 = por %p117, %p118
      %p120 = scmp.ne.s32.totalorder %s106, %s107
      %p121 = scmp.eq.s32.totalorder %s22, 1
      %p122 = por %p120, %p121
      %p124 = scmp.ne.s32.totalorder %s107, %s123
      %p125 = scmp.eq.s32.totalorder %s22, 0
      %p126 = por %p124, %p125
      %s127 = ssub.s32 %s23, %s42
      %s128 = ssub.s32 %s24, %s38
      %s129 = sor.u32 %s127, %s128
      %p130 = scmp.eq.s32.totalorder %s129, 0
      %s132 = sadd.s32 %s131, 1
      %s133 = scalar_select %p130, %s131, %s132
      %p136 = pneg %p130
      %p137 = scmp.eq.s32.totalorder %s16, 1
      %p138 = por %p136, %p137
      %p139 = scmp.ne.s32.totalorder %s131, %s134
      %p140 = scmp.eq.s32.totalorder %s16, 0
      %p141 = por %p139, %p140
      %p142 = scmp.ne.s32.totalorder %s131, %s134
      %p143 = scmp.eq.s32.totalorder %s21, 1
      %p144 = por %p142, %p143
      %p145 = scmp.ne.s32.totalorder %s134, %s135
      %p146 = scmp.eq.s32.totalorder %s21, 0
      %p147 = por %p145, %p146
      %p148 = scmp.ne.s32.totalorder %s134, %s135
      %p149 = scmp.eq.s32.totalorder %s22, 1
      %p150 = por %p148, %p149
      %p152 = scmp.ne.s32.totalorder %s135, %s151
      %p153 = scmp.eq.s32.totalorder %s22, 0
      %p154 = por %p152, %p153
      %p155 = scmp.le.s32.totalorder 1, %s16
      %p156 = scmp.lt.s32.totalorder %s16, 3
      %p157 = pnand %p155, %p156
      %p158 = pneg %p157
      // Predicated region
      $region9: #{tpu_custom_call.1} parent=5 // pred_check
        _
      $region10: #{tpu_custom_call.1} parent=5 // pred_check_branch
        %160 = sbr.rel (%p157) target = $region12
      $region11: #{tpu_custom_call.1} parent=5 // pred_region
        %s161 = ssub.s32 %s16, 1
        // Predicated region
        $region13: #{tpu_custom_call.1} parent=11 // pred_check
          %p162 = pneg %p91
        $region14: #{tpu_custom_call.1} parent=11 // pred_check_branch
          %164 = sbr.rel (%p162) target = $region16
        $region15: #{tpu_custom_call.1} parent=11 // pred_region
          %s165 = smul.u32 32, %s28
          %s167 = ssub.s32 4096, 4096
          %168 = vsyncadd [#allocation6], %s167
          %s169 = sadd.s32 %s27, %s165
          %s170 = smul.addr %s169, 128
          %s171 = scalar_lea.hbm %s1, %s170
          %s172 = sshll.u32 [#allocation5], 4
          %s173 = int_to_ptr.vmem [resolvable:$true] %s172
          %178 = dma.hbm_to_vmem [thread:$0]  %s171, 4096, %s173, [#allocation6], 128, 128, 8
        $region16: #{tpu_custom_call.1} parent=11 // pred_fallthru
          _
      $region12: #{tpu_custom_call.1} parent=5 // pred_fallthru
        _
      %p179 = scmp.lt.s32.totalorder %s16, 2
      // Predicated region
      $region17: #{tpu_custom_call.1} parent=5 // pred_check
        %p180 = pneg %p179
      $region18: #{tpu_custom_call.1} parent=5 // pred_check_branch
        %182 = sbr.rel (%p180) target = $region20
      $region19: #{tpu_custom_call.1} parent=5 // pred_region
        // Predicated region
        $region21: #{tpu_custom_call.1} parent=19 // pred_check
          %p183 = pneg %p57
        $region22: #{tpu_custom_call.1} parent=19 // pred_check_branch
          %185 = sbr.rel (%p183) target = $region24
        $region23: #{tpu_custom_call.1} parent=19 // pred_region
          %s186 = sand.u32 %s16, 1
          %s187 = scalar_lea.sflag [#allocation3], %s186
          %s188 = sand.u32 %s47, 1
          %s189 = smul.addr %s188, 128
          %s190 = scalar_lea.vmem [#allocation2], %s189
          %s191 = smul.u32 8, %s23
          %s192 = smul.u32 2, %s25
          %s194 = ssub.s32 2048, 2048
          %195 = vsyncadd %s187, %s194
          %s196 = smul.addr %s191, 2
          %s197 = sadd.s32 %s192, %s196
          %s198 = smul.addr %s197, 128
          %s199 = scalar_lea.hbm %s0, %s198
          %s200 = sshll.u32 %s190, 4
          %s201 = int_to_ptr.vmem [resolvable:$true] %s200
          %206 = dma.hbm_to_vmem [thread:$0]  %s199, 2048, %s201, %s187, 256, 256, 16
        $region24: #{tpu_custom_call.1} parent=19 // pred_fallthru
          _
        // Predicated region
        $region25: #{tpu_custom_call.1} parent=19 // pred_check
          %p207 = pneg %p113
        $region26: #{tpu_custom_call.1} parent=19 // pred_check_branch
          %209 = sbr.rel (%p207) target = $region28
        $region27: #{tpu_custom_call.1} parent=19 // pred_region
          %s210 = sand.u32 %s16, 1
          %s211 = scalar_lea.sflag [#allocation3], %s210
          %s212 = sand.u32 %s103, 1
          %s213 = smul.addr %s212, 64
          %s214 = scalar_lea.vmem [#allocation7], %s213
          %s215 = smul.u32 8, %s23
          %s217 = ssub.s32 1024, 1024
          %218 = vsyncadd %s211, %s217
          %s219 = sadd.s32 %s24, %s215
          %s220 = smul.addr %s219, 128
          %s221 = scalar_lea.hbm %s2, %s220
          %s222 = sshll.u32 %s214, 4
          %s223 = int_to_ptr.vmem [resolvable:$true] %s222
          %228 = dma.hbm_to_vmem [thread:$0]  %s221, 1024, %s223, %s211, 128, 128, 8
        $region28: #{tpu_custom_call.1} parent=19 // pred_fallthru
          _
      $region20: #{tpu_custom_call.1} parent=5 // pred_fallthru
        _
      %p229 = scmp.le.s32.totalorder 1, %s16
      %p230 = scmp.lt.s32.totalorder %s16, 3
      %p231 = pnand %p229, %p230
      %p232 = pneg %p231
      // Predicated region
      $region29: #{tpu_custom_call.1} parent=5 // pred_check
        _
      $region30: #{tpu_custom_call.1} parent=5 // pred_check_branch
        %234 = sbr.rel (%p231) target = $region32
      $region31: #{tpu_custom_call.1} parent=5 // pred_region
        %s235 = ssub.s32 %s16, 1
        %s236 = sand.u32 %s21, 1
        %s237 = scalar_lea.sflag [#allocation3], %s236
        %s238 = sand.u32 %s50, 1
        %s239 = smul.addr %s238, 128
        %s240 = scalar_lea.vmem [#allocation2], %s239
        // Predicated region
        $region33: #{tpu_custom_call.1} parent=31 // pred_check
          %p241 = pneg %p63
        $region34: #{tpu_custom_call.1} parent=31 // pred_check_branch
          %243 = sbr.rel (%p241) target = $region36
        $region35: #{tpu_custom_call.1} parent=31 // pred_region
          %244 = dma.done %s237, 2048
        $region36: #{tpu_custom_call.1} parent=31 // pred_fallthru
          _
        // Predicated region
        $region37: #{tpu_custom_call.1} parent=31 // pred_check
          %p245 = pneg %p91
        $region38: #{tpu_custom_call.1} parent=31 // pred_check_branch
          %247 = sbr.rel (%p245) target = $region40
        $region39: #{tpu_custom_call.1} parent=31 // pred_region
          %248 = dma.done [#allocation6], 4096
        $region40: #{tpu_custom_call.1} parent=31 // pred_fallthru
          _
        %s249 = sand.u32 %s21, 1
        %s250 = scalar_lea.sflag [#allocation3], %s249
        %s251 = sand.u32 %s106, 1
        %s252 = smul.addr %s251, 64
        %s253 = scalar_lea.vmem [#allocation7], %s252
        // Predicated region
        $region41: #{tpu_custom_call.1} parent=31 // pred_check
          %p254 = pneg %p119
        $region42: #{tpu_custom_call.1} parent=31 // pred_check_branch
          %256 = sbr.rel (%p254) target = $region44
        $region43: #{tpu_custom_call.1} parent=31 // pred_region
          %257 = dma.done %s250, 1024
        $region44: #{tpu_custom_call.1} parent=31 // pred_fallthru
          _
        %s258 = sand.u32 %s21, 1
        %s259 = scalar_lea.sflag [#allocation3], %s258
        %s260 = sand.u32 %s50, 1
        %s261 = smul.addr %s260, 128
        %s262 = scalar_lea.vmem [#allocation2], %s261
        %p263 = pneg %p63
        %p264 = pneg %p60
        %p265 = pneg %p91
        %p266 = pneg %p88
        %s267 = sand.u32 %s21, 1
        %s268 = scalar_lea.sflag [#allocation3], %s267
        %s269 = sand.u32 %s106, 1
        %s270 = smul.addr %s269, 64
        %s271 = scalar_lea.vmem [#allocation7], %s270
        %p272 = pneg %p119
        %p273 = pneg %p116
        %p274 = pneg %p147
        %p275 = pneg %p144
        %s276 = sand.u32 %s134, 1
        %s277 = scalar_lea.sflag [#allocation4], %s276
        %s278 = sand.u32 %s134, 1
        %s279 = smul.addr %s278, 64
        %s280 = scalar_lea.vmem [#allocation8], %s279
        %s281 = smul.u32 8, %s26
        %s282 = smul.u32 2, %s28
        %s283 = smul.u32 32, %s28
        %s284 = smul.u32 8, %s26
        %s285 = smul.u32 8, %s26
        %p286 = scmp.eq.s32.totalorder %s28, 0
        // Predicated region
        $region45: #{tpu_custom_call.1} parent=31 // pred_check
          %p287 = pneg %p286
        $region46: #{tpu_custom_call.1} parent=31 // pred_check_branch
          %289 = sbr.rel (%p287) target = $region48
        $region47: #{tpu_custom_call.1} parent=31 // pred_region
          %290 = vst [vmem:[%s280] sm:$0xff] 0.0
          %291 = vst [vmem:[%s280 + $0x8] sm:$0xff] 0.0
          %292 = vst [vmem:[%s280 + $0x10] sm:$0xff] 0.0
          %293 = vst [vmem:[%s280 + $0x18] sm:$0xff] 0.0
          %294 = vst [vmem:[%s280 + $0x20] sm:$0xff] 0.0
          %295 = vst [vmem:[%s280 + $0x28] sm:$0xff] 0.0
          %296 = vst [vmem:[%s280 + $0x30] sm:$0xff] 0.0
          %297 = vst [vmem:[%s280 + $0x38] sm:$0xff] 0.0
        $region48: #{tpu_custom_call.1} parent=31 // pred_fallthru
          _
        %v298 = vld [vmem:[%s280] sm:$0xff]
        %v299 = vld [vmem:[%s280 + $0x8] sm:$0xff]
        %v300 = vld [vmem:[%s280 + $0x10] sm:$0xff]
        %v301 = vld [vmem:[%s280 + $0x18] sm:$0xff]
        %v302 = vld [vmem:[%s280 + $0x20] sm:$0xff]
        %v303 = vld [vmem:[%s280 + $0x28] sm:$0xff]
        %v304 = vld [vmem:[%s280 + $0x30] sm:$0xff]
        %v305 = vld [vmem:[%s280 + $0x38] sm:$0xff]
        %v306 = vld [vmem:[%s240] sm:$0xff]
        %v307 = vld [vmem:[%s240 + $0x8] sm:$0xff]
        %v308 = vld [vmem:[%s240 + $0x10] sm:$0xff]
        %v309 = vld [vmem:[%s240 + $0x18] sm:$0xff]
        %v310 = vld [vmem:[%s240 + $0x20] sm:$0xff]
        %v311 = vld [vmem:[%s240 + $0x28] sm:$0xff]
        %v312 = vld [vmem:[%s240 + $0x30] sm:$0xff]
        %v313 = vld [vmem:[%s240 + $0x38] sm:$0xff]
        %v314 = vld [vmem:[%s240 + $0x40] sm:$0xff]
        %v315 = vld [vmem:[%s240 + $0x48] sm:$0xff]
        %v316 = vld [vmem:[%s240 + $0x50] sm:$0xff]
        %v317 = vld [vmem:[%s240 + $0x58] sm:$0xff]
        %v318 = vld [vmem:[%s240 + $0x60] sm:$0xff]
        %v319 = vld [vmem:[%s240 + $0x68] sm:$0xff]
        %v320 = vld [vmem:[%s240 + $0x70] sm:$0xff]
        %v321 = vld [vmem:[%s240 + $0x78] sm:$0xff]
        %v322 = vld [vmem:[#allocation5] sm:$0xff]
        %v323 = vld [vmem:[#allocation5 + $0x8] sm:$0xff]
        %v324 = vld [vmem:[#allocation5 + $0x10] sm:$0xff]
        %v325 = vld [vmem:[#allocation5 + $0x18] sm:$0xff]
        %v326 = vld [vmem:[#allocation5 + $0x20] sm:$0xff]
        %v327 = vld [vmem:[#allocation5 + $0x28] sm:$0xff]
        %v328 = vld [vmem:[#allocation5 + $0x30] sm:$0xff]
        %v329 = vld [vmem:[#allocation5 + $0x38] sm:$0xff]
        %v330 = vld [vmem:[#allocation5 + $0x40] sm:$0xff]
        %v331 = vld [vmem:[#allocation5 + $0x48] sm:$0xff]
        %v332 = vld [vmem:[#allocation5 + $0x50] sm:$0xff]
        %v333 = vld [vmem:[#allocation5 + $0x58] sm:$0xff]
        %v334 = vld [vmem:[#allocation5 + $0x60] sm:$0xff]
        %v335 = vld [vmem:[#allocation5 + $0x68] sm:$0xff]
        %v336 = vld [vmem:[#allocation5 + $0x70] sm:$0xff]
        %v337 = vld [vmem:[#allocation5 + $0x78] sm:$0xff]
        %v338 = vld [vmem:[#allocation5 + $0x80] sm:$0xff]
        %v339 = vld [vmem:[#allocation5 + $0x88] sm:$0xff]
        %v340 = vld [vmem:[#allocation5 + $0x90] sm:$0xff]
        %v341 = vld [vmem:[#allocation5 + $0x98] sm:$0xff]
        %v342 = vld [vmem:[#allocation5 + $0xa0] sm:$0xff]
        %v343 = vld [vmem:[#allocation5 + $0xa8] sm:$0xff]
        %v344 = vld [vmem:[#allocation5 + $0xb0] sm:$0xff]
        %v345 = vld [vmem:[#allocation5 + $0xb8] sm:$0xff]
        %v346 = vld [vmem:[#allocation5 + $0xc0] sm:$0xff]
        %v347 = vld [vmem:[#allocation5 + $0xc8] sm:$0xff]
        %v348 = vld [vmem:[#allocation5 + $0xd0] sm:$0xff]
        %v349 = vld [vmem:[#allocation5 + $0xd8] sm:$0xff]
        %v350 = vld [vmem:[#allocation5 + $0xe0] sm:$0xff]
        %v351 = vld [vmem:[#allocation5 + $0xe8] sm:$0xff]
        %v352 = vld [vmem:[#allocation5 + $0xf0] sm:$0xff]
        %v353 = vld [vmem:[#allocation5 + $0xf8] sm:$0xff]
        %354 = vmatprep.subr.mxu0 0.0
        %355 = vmatpush1.msra.mxu0 %v322
        %356 = vmatprep.subr.mxu0 0.0
        %357 = vmatpush1.msra.mxu0 %v323
        %358 = vmatprep.subr.mxu0 0.0
        %359 = vmatpush1.msra.mxu0 %v324
        %360 = vmatprep.subr.mxu0 0.0
        %361 = vmatpush1.msra.mxu0 %v325
        %362 = vmatprep.subr.mxu0 0.0
        %363 = vmatpush1.msra.mxu0 %v326
        %364 = vmatprep.subr.mxu0 0.0
        %365 = vmatpush1.msra.mxu0 %v327
        %366 = vmatprep.subr.mxu0 0.0
        %367 = vmatpush1.msra.mxu0 %v328
        %368 = vmatprep.subr.mxu0 0.0
        %369 = vmatpush1.msra.mxu0 %v329
        %370 = vmatprep.subr.mxu0 0.0
        %371 = vmatpush1.msra.mxu0 %v330
        %372 = vmatprep.subr.mxu0 0.0
        %373 = vmatpush1.msra.mxu0 %v331
        %374 = vmatprep.subr.mxu0 0.0
        %375 = vmatpush1.msra.mxu0 %v332
        %376 = vmatprep.subr.mxu0 0.0
        %377 = vmatpush1.msra.mxu0 %v333
        %378 = vmatprep.subr.mxu0 0.0
        %379 = vmatpush1.msra.mxu0 %v334
        %380 = vmatprep.subr.mxu0 0.0
        %381 = vmatpush1.msra.mxu0 %v335
        %382 = vmatprep.subr.mxu0 0.0
        %383 = vmatpush1.msra.mxu0 %v336
        %384 = vmatprep.subr.mxu0 0.0
        %385 = vmatpush1.msra.mxu0 %v337
        %386 = vmatprep.subr.mxu0 0.0
        %387 = vmatpush1.msra.mxu0 %v338
        %388 = vmatprep.subr.mxu0 0.0
        %389 = vmatpush1.msra.mxu0 %v339
        %390 = vmatprep.subr.mxu0 0.0
        %391 = vmatpush1.msra.mxu0 %v340
        %392 = vmatprep.subr.mxu0 0.0
        %393 = vmatpush1.msra.mxu0 %v341
        %394 = vmatprep.subr.mxu0 0.0
        %395 = vmatpush1.msra.mxu0 %v342
        %396 = vmatprep.subr.mxu0 0.0
        %397 = vmatpush1.msra.mxu0 %v343
        %398 = vmatprep.subr.mxu0 0.0
        %399 = vmatpush1.msra.mxu0 %v344
        %400 = vmatprep.subr.mxu0 0.0
        %401 = vmatpush1.msra.mxu0 %v345
        %402 = vmatprep.subr.mxu0 0.0
        %403 = vmatpush1.msra.mxu0 %v346
        %404 = vmatprep.subr.mxu0 0.0
        %405 = vmatpush1.msra.mxu0 %v347
        %406 = vmatprep.subr.mxu0 0.0
        %407 = vmatpush1.msra.mxu0 %v348
        %408 = vmatprep.subr.mxu0 0.0
        %409 = vmatpush1.msra.mxu0 %v349
        %410 = vmatprep.subr.mxu0 0.0
        %411 = vmatpush1.msra.mxu0 %v350
        %412 = vmatprep.subr.mxu0 0.0
        %413 = vmatpush1.msra.mxu0 %v351
        %414 = vmatprep.subr.mxu0 0.0
        %415 = vmatpush1.msra.mxu0 %v352
        %416 = vmatprep.subr.mxu0 0.0
        %417 = vmatpush1.msra.mxu0 %v353
        %418 = vmatprep.mubr.f32.mxu0 %v307
        %419 = vmatmul.mubr.f32.gmra.mrb[0].mxu0 %v306
        %v420 = vpop.f32.mrb[0].mxu0
        %v421 = vadd.f32 0.0, %v420
        %v422 = vpop.f32.mrb[0].mxu0
        %423 = vmatprep.mubr.f32.mxu0 %v309
        %424 = vmatmul.mubr.f32.gmra.mrb[0].mxu0 %v308
        %v425 = vpop.f32.mrb[0].mxu0
        %v426 = vadd.f32 0.0, %v425
        %v427 = vpop.f32.mrb[0].mxu0
        %428 = vmatprep.mubr.f32.mxu0 %v311
        %429 = vmatmul.mubr.f32.gmra.mrb[0].mxu0 %v310
        %v430 = vpop.f32.mrb[0].mxu0
        %v431 = vadd.f32 0.0, %v430
        %v432 = vpop.f32.mrb[0].mxu0
        %433 = vmatprep.mubr.f32.mxu0 %v313
        %434 = vmatmul.mubr.f32.gmra.mrb[0].mxu0 %v312
        %v435 = vpop.f32.mrb[0].mxu0
        %v436 = vadd.f32 0.0, %v435
        %v437 = vpop.f32.mrb[0].mxu0
        %438 = vmatprep.mubr.f32.mxu0 %v315
        %439 = vmatmul.mubr.f32.gmra.mrb[0].mxu0 %v314
        %v440 = vpop.f32.mrb[0].mxu0
        %v441 = vadd.f32 0.0, %v440
        %v442 = vpop.f32.mrb[0].mxu0
        %443 = vmatprep.mubr.f32.mxu0 %v317
        %444 = vmatmul.mubr.f32.gmra.mrb[0].mxu0 %v316
        %v445 = vpop.f32.mrb[0].mxu0
        %v446 = vadd.f32 0.0, %v445
        %v447 = vpop.f32.mrb[0].mxu0
        %448 = vmatprep.mubr.f32.mxu0 %v319
        %449 = vmatmul.mubr.f32.gmra.mrb[0].mxu0 %v318
        %v450 = vpop.f32.mrb[0].mxu0
        %v451 = vadd.f32 0.0, %v450
        %v452 = vpop.f32.mrb[0].mxu0
        %453 = vmatprep.mubr.f32.mxu0 %v321
        %454 = vmatmul.mubr.f32.gmra.mrb[0].mxu0 %v320
        %v455 = vpop.f32.mrb[0].mxu0
        %v456 = vadd.f32 0.0, %v455
        %v457 = vpop.f32.mrb[0].mxu0
        %458 = vdwg.mxu0
        %v459 = vadd.f32 %v298, %v421
        %v460 = vadd.f32 %v299, %v426
        %v461 = vadd.f32 %v300, %v431
        %v462 = vadd.f32 %v301, %v436
        %v463 = vadd.f32 %v302, %v441
        %v464 = vadd.f32 %v303, %v446
        %v465 = vadd.f32 %v304, %v451
        %v466 = vadd.f32 %v305, %v456
        %467 = vst [vmem:[%s280] sm:$0xff] %v459
        %468 = vst [vmem:[%s280 + $0x8] sm:$0xff] %v460
        %469 = vst [vmem:[%s280 + $0x10] sm:$0xff] %v461
        %470 = vst [vmem:[%s280 + $0x18] sm:$0xff] %v462
        %471 = vst [vmem:[%s280 + $0x20] sm:$0xff] %v463
        %472 = vst [vmem:[%s280 + $0x28] sm:$0xff] %v464
        %473 = vst [vmem:[%s280 + $0x30] sm:$0xff] %v465
        %474 = vst [vmem:[%s280 + $0x38] sm:$0xff] %v466
        // Predicated region
        $region49: #{tpu_custom_call.1} parent=31 // pred_check
          %p475 = pneg %p286
        $region50: #{tpu_custom_call.1} parent=31 // pred_check_branch
          %477 = sbr.rel (%p475) target = $region52
        $region51: #{tpu_custom_call.1} parent=31 // pred_region
          %v478 = vld [vmem:[%s280] sm:$0xff]
          %v479 = vld [vmem:[%s280 + $0x8] sm:$0xff]
          %v480 = vld [vmem:[%s280 + $0x10] sm:$0xff]
          %v481 = vld [vmem:[%s280 + $0x18] sm:$0xff]
          %v482 = vld [vmem:[%s280 + $0x20] sm:$0xff]
          %v483 = vld [vmem:[%s280 + $0x28] sm:$0xff]
          %v484 = vld [vmem:[%s280 + $0x30] sm:$0xff]
          %v485 = vld [vmem:[%s280 + $0x38] sm:$0xff]
          %v486 = vld [vmem:[%s253] sm:$0xff]
          %v487 = vld [vmem:[%s253 + $0x8] sm:$0xff]
          %v488 = vld [vmem:[%s253 + $0x10] sm:$0xff]
          %v489 = vld [vmem:[%s253 + $0x18] sm:$0xff]
          %v490 = vld [vmem:[%s253 + $0x20] sm:$0xff]
          %v491 = vld [vmem:[%s253 + $0x28] sm:$0xff]
          %v492 = vld [vmem:[%s253 + $0x30] sm:$0xff]
          %v493 = vld [vmem:[%s253 + $0x38] sm:$0xff]
          %v494 = vadd.f32 %v478, %v486
          %v495 = vadd.f32 %v479, %v487
          %v496 = vadd.f32 %v480, %v488
          %v497 = vadd.f32 %v481, %v489
          %v498 = vadd.f32 %v482, %v490
          %v499 = vadd.f32 %v483, %v491
          %v500 = vadd.f32 %v484, %v492
          %v501 = vadd.f32 %v485, %v493
          %v502 = vmul.f32 %v494, 0.5
          %v503 = vmul.f32 %v495, 0.5
          %v504 = vmul.f32 %v496, 0.5
          %v505 = vmul.f32 %v497, 0.5
          %v506 = vmul.f32 %v498, 0.5
          %v507 = vmul.f32 %v499, 0.5
          %v508 = vmul.f32 %v500, 0.5
          %v509 = vmul.f32 %v501, 0.5
          %v510 = vmul.f32 %v494, 0.044715
          %v511 = vmul.f32 %v495, 0.044715
          %v512 = vmul.f32 %v496, 0.044715
          %v513 = vmul.f32 %v497, 0.044715
          %v514 = vmul.f32 %v498, 0.044715
          %v515 = vmul.f32 %v499, 0.044715
          %v516 = vmul.f32 %v500, 0.044715
          %v517 = vmul.f32 %v501, 0.044715
          %v518 = vmul.f32 %v510, %v494
          %v519 = vmul.f32 %v511, %v495
          %v520 = vmul.f32 %v512, %v496
          %v521 = vmul.f32 %v513, %v497
          %v522 = vmul.f32 %v514, %v498
          %v523 = vmul.f32 %v515, %v499
          %v524 = vmul.f32 %v516, %v500
          %v525 = vmul.f32 %v517, %v501
          %v526 = vmul.f32 %v518, %v494
          %v527 = vmul.f32 %v519, %v495
          %v528 = vmul.f32 %v520, %v496
          %v529 = vmul.f32 %v521, %v497
          %v530 = vmul.f32 %v522, %v498
          %v531 = vmul.f32 %v523, %v499
          %v532 = vmul.f32 %v524, %v500
          %v533 = vmul.f32 %v525, %v501
          %v534 = vadd.f32 %v494, %v526
          %v535 = vadd.f32 %v495, %v527
          %v536 = vadd.f32 %v496, %v528
          %v537 = vadd.f32 %v497, %v529
          %v538 = vadd.f32 %v498, %v530
          %v539 = vadd.f32 %v499, %v531
          %v540 = vadd.f32 %v500, %v532
          %v541 = vadd.f32 %v501, %v533
          %v542 = vmul.f32 %v534, 0.7978846
          %v543 = vmul.f32 %v535, 0.7978846
          %v544 = vmul.f32 %v536, 0.7978846
          %v545 = vmul.f32 %v537, 0.7978846
          %v546 = vmul.f32 %v538, 0.7978846
          %v547 = vmul.f32 %v539, 0.7978846
          %v548 = vmul.f32 %v540, 0.7978846
          %v549 = vmul.f32 %v541, 0.7978846
          %v550 = vtanh.pop %v542
          %v551 = vtanh.pop %v543
          %v552 = vtanh.pop %v544
          %v553 = vtanh.pop %v545
          %v554 = vtanh.pop %v546
          %v555 = vtanh.pop %v547
          %v556 = vtanh.pop %v548
          %v557 = vtanh.pop %v549
          %v558 = vadd.f32 %v550, 1.0
          %v559 = vadd.f32 %v551, 1.0
          %v560 = vadd.f32 %v552, 1.0
          %v561 = vadd.f32 %v553, 1.0
          %v562 = vadd.f32 %v554, 1.0
          %v563 = vadd.f32 %v555, 1.0
          %v564 = vadd.f32 %v556, 1.0
          %v565 = vadd.f32 %v557, 1.0
          %v566 = vmul.f32 %v502, %v558
          %v567 = vmul.f32 %v503, %v559
          %v568 = vmul.f32 %v504, %v560
          %v569 = vmul.f32 %v505, %v561
          %v570 = vmul.f32 %v506, %v562
          %v571 = vmul.f32 %v507, %v563
          %v572 = vmul.f32 %v508, %v564
          %v573 = vmul.f32 %v509, %v565
          %v574 = vadd.f32 %v566, %v478
          %v575 = vadd.f32 %v567, %v479
          %v576 = vadd.f32 %v568, %v480
          %v577 = vadd.f32 %v569, %v481
          %v578 = vadd.f32 %v570, %v482
          %v579 = vadd.f32 %v571, %v483
          %v580 = vadd.f32 %v572, %v484
          %v581 = vadd.f32 %v573, %v485
          %v582 = vmul.f32 %v574, 0.5
          %v583 = vmul.f32 %v575, 0.5
          %v584 = vmul.f32 %v576, 0.5
          %v585 = vmul.f32 %v577, 0.5
          %v586 = vmul.f32 %v578, 0.5
          %v587 = vmul.f32 %v579, 0.5
          %v588 = vmul.f32 %v580, 0.5
          %v589 = vmul.f32 %v581, 0.5
          %v590 = vmul.f32 %v574, 0.70710677
          %v591 = vmul.f32 %v575, 0.70710677
          %v592 = vmul.f32 %v576, 0.70710677
          %v593 = vmul.f32 %v577, 0.70710677
          %v594 = vmul.f32 %v578, 0.70710677
          %v595 = vmul.f32 %v579, 0.70710677
          %v596 = vmul.f32 %v580, 0.70710677
          %v597 = vmul.f32 %v581, 0.70710677
          %vm598 = vcmp.ge.f32.partialorder %v590, 0.0
          %vm599 = vcmp.ge.f32.partialorder %v591, 0.0
          %vm600 = vcmp.ge.f32.partialorder %v592, 0.0
          %vm601 = vcmp.ge.f32.partialorder %v593, 0.0
          %vm602 = vcmp.ge.f32.partialorder %v594, 0.0
          %vm603 = vcmp.ge.f32.partialorder %v595, 0.0
          %vm604 = vcmp.ge.f32.partialorder %v596, 0.0
          %vm605 = vcmp.ge.f32.partialorder %v597, 0.0
          %v606 = vsel %vm598, 1.0, -1.0
          %v607 = vsel %vm599, 1.0, -1.0
          %v608 = vsel %vm600, 1.0, -1.0
          %v609 = vsel %vm601, 1.0, -1.0
          %v610 = vsel %vm602, 1.0, -1.0
          %v611 = vsel %vm603, 1.0, -1.0
          %v612 = vsel %vm604, 1.0, -1.0
          %v613 = vsel %vm605, 1.0, -1.0
          %v614 = vand.u32 2147483647, %v590
          %v615 = vand.u32 2147483647, %v591
          %v616 = vand.u32 2147483647, %v592
          %v617 = vand.u32 2147483647, %v593
          %v618 = vand.u32 2147483647, %v594
          %v619 = vand.u32 2147483647, %v595
          %v620 = vand.u32 2147483647, %v596
          %v621 = vand.u32 2147483647, %v597
          %v622 = vmul.f32 %v614, 0.3275911
          %v623 = vmul.f32 %v615, 0.3275911
          %v624 = vmul.f32 %v616, 0.3275911
          %v625 = vmul.f32 %v617, 0.3275911
          %v626 = vmul.f32 %v618, 0.3275911
          %v627 = vmul.f32 %v619, 0.3275911
          %v628 = vmul.f32 %v620, 0.3275911
          %v629 = vmul.f32 %v621, 0.3275911
          %v630 = vadd.f32 %v622, 1.0
          %v631 = vadd.f32 %v623, 1.0
          %v632 = vadd.f32 %v624, 1.0
          %v633 = vadd.f32 %v625, 1.0
          %v634 = vadd.f32 %v626, 1.0
          %v635 = vadd.f32 %v627, 1.0
          %v636 = vadd.f32 %v628, 1.0
          %v637 = vadd.f32 %v629, 1.0
          %v638 = vrcp.pop %v630
          %v639 = vrcp.pop %v631
          %v640 = vrcp.pop %v632
          %v641 = vrcp.pop %v633
          %v642 = vrcp.pop %v634
          %v643 = vrcp.pop %v635
          %v644 = vrcp.pop %v636
          %v645 = vrcp.pop %v637
          %v646 = vmul.f32 %v638, 1.0614054
          %v647 = vmul.f32 %v639, 1.0614054
          %v648 = vmul.f32 %v640, 1.0614054
          %v649 = vmul.f32 %v641, 1.0614054
          %v650 = vmul.f32 %v642, 1.0614054
          %v651 = vmul.f32 %v643, 1.0614054
          %v652 = vmul.f32 %v644, 1.0614054
          %v653 = vmul.f32 %v645, 1.0614054
          %v654 = vadd.f32 %v646, -1.4531521
          %v655 = vadd.f32 %v647, -1.4531521
          %v656 = vadd.f32 %v648, -1.4531521
          %v657 = vadd.f32 %v649, -1.4531521
          %v658 = vadd.f32 %v650, -1.4531521
          %v659 = vadd.f32 %v651, -1.4531521
          %v660 = vadd.f32 %v652, -1.4531521
          %v661 = vadd.f32 %v653, -1.4531521
          %v662 = vmul.f32 %v654, %v638
          %v663 = vmul.f32 %v655, %v639
          %v664 = vmul.f32 %v656, %v640
          %v665 = vmul.f32 %v657, %v641
          %v666 = vmul.f32 %v658, %v642
          %v667 = vmul.f32 %v659, %v643
          %v668 = vmul.f32 %v660, %v644
          %v669 = vmul.f32 %v661, %v645
          %v670 = vadd.f32 %v662, 1.4214138
          %v671 = vadd.f32 %v663, 1.4214138
          %v672 = vadd.f32 %v664, 1.4214138
          %v673 = vadd.f32 %v665, 1.4214138
          %v674 = vadd.f32 %v666, 1.4214138
          %v675 = vadd.f32 %v667, 1.4214138
          %v676 = vadd.f32 %v668, 1.4214138
          %v677 = vadd.f32 %v669, 1.4214138
          %v678 = vmul.f32 %v670, %v638
          %v679 = vmul.f32 %v671, %v639
          %v680 = vmul.f32 %v672, %v640
          %v681 = vmul.f32 %v673, %v641
          %v682 = vmul.f32 %v674, %v642
          %v683 = vmul.f32 %v675, %v643
          %v684 = vmul.f32 %v676, %v644
          %v685 = vmul.f32 %v677, %v645
          %v686 = vadd.f32 %v678, -0.28449672
          %v687 = vadd.f32 %v679, -0.28449672
          %v688 = vadd.f32 %v680, -0.28449672
          %v689 = vadd.f32 %v681, -0.28449672
          %v690 = vadd.f32 %v682, -0.28449672
          %v691 = vadd.f32 %v683, -0.28449672
          %v692 = vadd.f32 %v684, -0.28449672
          %v693 = vadd.f32 %v685, -0.28449672
          %v694 = vmul.f32 %v686, %v638
          %v695 = vmul.f32 %v687, %v639
          %v696 = vmul.f32 %v688, %v640
          %v697 = vmul.f32 %v689, %v641
          %v698 = vmul.f32 %v690, %v642
          %v699 = vmul.f32 %v691, %v643
          %v700 = vmul.f32 %v692, %v644
          %v701 = vmul.f32 %v693, %v645
          %v702 = vadd.f32 %v694, 0.2548296
          %v703 = vadd.f32 %v695, 0.2548296
          %v704 = vadd.f32 %v696, 0.2548296
          %v705 = vadd.f32 %v697, 0.2548296
          %v706 = vadd.f32 %v698, 0.2548296
          %v707 = vadd.f32 %v699, 0.2548296
          %v708 = vadd.f32 %v700, 0.2548296
          %v709 = vadd.f32 %v701, 0.2548296
          %v710 = vmul.f32 %v702, %v638
          %v711 = vmul.f32 %v703, %v639
          %v712 = vmul.f32 %v704, %v640
          %v713 = vmul.f32 %v705, %v641
          %v714 = vmul.f32 %v706, %v642
          %v715 = vmul.f32 %v707, %v643
          %v716 = vmul.f32 %v708, %v644
          %v717 = vmul.f32 %v709, %v645
          %v718 = vsub.f32 0.0, %v614
          %v719 = vsub.f32 0.0, %v615
          %v720 = vsub.f32 0.0, %v616
          %v721 = vsub.f32 0.0, %v617
          %v722 = vsub.f32 0.0, %v618
          %v723 = vsub.f32 0.0, %v619
          %v724 = vsub.f32 0.0, %v620
          %v725 = vsub.f32 0.0, %v621
          %v726 = vmul.f32 %v718, %v614
          %v727 = vmul.f32 %v719, %v615
          %v728 = vmul.f32 %v720, %v616
          %v729 = vmul.f32 %v721, %v617
          %v730 = vmul.f32 %v722, %v618
          %v731 = vmul.f32 %v723, %v619
          %v732 = vmul.f32 %v724, %v620
          %v733 = vmul.f32 %v725, %v621
          %v734 = vmul.f32 %v726, 1.442695
          %v735 = vpow.pop %v734
          %v736 = vmul.f32 %v727, 1.442695
          %v737 = vpow.pop %v736
          %v738 = vmul.f32 %v728, 1.442695
          %v739 = vpow.pop %v738
          %v740 = vmul.f32 %v729, 1.442695
          %v741 = vpow.pop %v740
          %v742 = vmul.f32 %v730, 1.442695
          %v743 = vpow.pop %v742
          %v744 = vmul.f32 %v731, 1.442695
          %v745 = vpow.pop %v744
          %v746 = vmul.f32 %v732, 1.442695
          %v747 = vpow.pop %v746
          %v748 = vmul.f32 %v733, 1.442695
          %v749 = vpow.pop %v748
          %v750 = vmul.f32 %v710, %v735
          %v751 = vmul.f32 %v711, %v737
          %v752 = vmul.f32 %v712, %v739
          %v753 = vmul.f32 %v713, %v741
          %v754 = vmul.f32 %v714, %v743
          %v755 = vmul.f32 %v715, %v745
          %v756 = vmul.f32 %v716, %v747
          %v757 = vmul.f32 %v717, %v749
          %v758 = vsub.f32 1.0, %v750
          %v759 = vsub.f32 1.0, %v751
          %v760 = vsub.f32 1.0, %v752
          %v761 = vsub.f32 1.0, %v753
          %v762 = vsub.f32 1.0, %v754
          %v763 = vsub.f32 1.0, %v755
          %v764 = vsub.f32 1.0, %v756
          %v765 = vsub.f32 1.0, %v757
          %v766 = vmul.f32 %v606, %v758
          %v767 = vmul.f32 %v607, %v759
          %v768 = vmul.f32 %v608, %v760
          %v769 = vmul.f32 %v609, %v761
          %v770 = vmul.f32 %v610, %v762
          %v771 = vmul.f32 %v611, %v763
          %v772 = vmul.f32 %v612, %v764
          %v773 = vmul.f32 %v613, %v765
          %v774 = vadd.f32 %v766, 1.0
          %v775 = vadd.f32 %v767, 1.0
          %v776 = vadd.f32 %v768, 1.0
          %v777 = vadd.f32 %v769, 1.0
          %v778 = vadd.f32 %v770, 1.0
          %v779 = vadd.f32 %v771, 1.0
          %v780 = vadd.f32 %v772, 1.0
          %v781 = vadd.f32 %v773, 1.0
          %v782 = vmul.f32 %v582, %v774
          %v783 = vmul.f32 %v583, %v775
          %v784 = vmul.f32 %v584, %v776
          %v785 = vmul.f32 %v585, %v777
          %v786 = vmul.f32 %v586, %v778
          %v787 = vmul.f32 %v587, %v779
          %v788 = vmul.f32 %v588, %v780
          %v789 = vmul.f32 %v589, %v781
          %790 = vst [vmem:[%s280] sm:$0xff] %v782
          %791 = vst [vmem:[%s280 + $0x8] sm:$0xff] %v783
          %792 = vst [vmem:[%s280 + $0x10] sm:$0xff] %v784
          %793 = vst [vmem:[%s280 + $0x18] sm:$0xff] %v785
          %794 = vst [vmem:[%s280 + $0x20] sm:$0xff] %v786
          %795 = vst [vmem:[%s280 + $0x28] sm:$0xff] %v787
          %796 = vst [vmem:[%s280 + $0x30] sm:$0xff] %v788
          %797 = vst [vmem:[%s280 + $0x38] sm:$0xff] %v789
        $region52: #{tpu_custom_call.1} parent=31 // pred_fallthru
          _
        %s798 = sand.u32 %s134, 1
        %s799 = scalar_lea.sflag [#allocation4], %s798
        %s800 = sand.u32 %s134, 1
        %s801 = smul.addr %s800, 64
        %s802 = scalar_lea.vmem [#allocation8], %s801
        // Predicated region
        $region53: #{tpu_custom_call.1} parent=31 // pred_check
          %p803 = pneg %p144
        $region54: #{tpu_custom_call.1} parent=31 // pred_check_branch
          %805 = sbr.rel (%p803) target = $region56
        $region55: #{tpu_custom_call.1} parent=31 // pred_region
          %s806 = smul.u32 8, %s26
          %s808 = ssub.s32 1024, 1024
          %809 = vsyncadd %s799, %s808
          %s810 = sadd.s32 %s27, %s806
          %s811 = smul.addr %s810, 128
          %s812 = scalar_lea.hbm %s3, %s811
          %s813 = sshll.u32 %s802, 4
          %s814 = int_to_ptr.vmem [resolvable:$true] %s813
          %819 = dma.vmem_to_hbm [thread:$0]  %s814, 1024, %s812, %s799, 128, 128, 8
        $region56: #{tpu_custom_call.1} parent=31 // pred_fallthru
          _
      $region32: #{tpu_custom_call.1} parent=5 // pred_fallthru
        _
      %p820 = scmp.le.s32.totalorder 2, %s16
      // Predicated region
      $region57: #{tpu_custom_call.1} parent=5 // pred_check
        %p821 = pneg %p820
      $region58: #{tpu_custom_call.1} parent=5 // pred_check_branch
        %823 = sbr.rel (%p821) target = $region60
      $region59: #{tpu_custom_call.1} parent=5 // pred_region
        %s824 = ssub.s32 %s16, 2
        // Predicated region
        $region61: #{tpu_custom_call.1} parent=59 // pred_check
          %p825 = pneg %p150
        $region62: #{tpu_custom_call.1} parent=59 // pred_check_branch
          %827 = sbr.rel (%p825) target = $region64
        $region63: #{tpu_custom_call.1} parent=59 // pred_region
          %s828 = sand.u32 %s135, 1
          %s829 = scalar_lea.sflag [#allocation4], %s828
          %s830 = sand.u32 %s135, 1
          %s831 = smul.addr %s830, 64
          %s832 = scalar_lea.vmem [#allocation8], %s831
          %833 = dma.done %s829, 1024
        $region64: #{tpu_custom_call.1} parent=59 // pred_fallthru
          _
      $region60: #{tpu_custom_call.1} parent=5 // pred_fallthru
        _
    $region6: #{tpu_custom_call.1} parent=1 // loop_footer
      %s20 = sadd.s32 1, %s16
    $region7: #{tpu_custom_call.1} parent=1 // loop_footer_branch
      %15 = sbr.rel target = $region3
    $region8: #{tpu_custom_call.1} parent=1 // loop_exit
      _
    %834 = vsyncpa [#allocation3], 1
    %s835 = scalar_lea.sflag [#allocation3], 1
    %836 = vsyncpa %s835, 1
    %837 = vsyncpa [#allocation6], 1
    %838 = vsyncpa [#allocation4], 1
    %s839 = scalar_lea.sflag [#allocation4], 1
    %840 = vsyncpa %s839, 1

</llo_original>
